<compile_context>
chip_gen: v7x
topology: tpu7x:2x2x1
jax: 0.10.0
libtpu: 0.0.40
codegen_flags: <defaults>
</compile_context>

<pallas_src>
import functools

import numpy as np
import jax
import jax.numpy as jnp
from jax.experimental import pallas as pl
from jax.experimental.pallas import tpu as pltpu


def _cdiv(a, b):
    return (a + b - 1) // b


def _ctc1d_kernel_halo(x_ref, h_ref, w_ref, b_ref, o_ref, xw_ref, *,
                       num_taps, tile_q):
    # x_ref:  (1, tile_q, C_in)          current input tile (padded rows)
    # h_ref:  (1, 1, D, C_in)            halo: first D padded rows of next tile
    # w_ref:  (num_taps, C_in, stride*C_out)   phase-packed weights (resident)
    # b_ref:  (1, stride*C_out)                phase-packed bias
    # o_ref:  (1, tile_q, stride*C_out)        one output q-tile
    # xw_ref: (tile_q + D, C_in)               VMEM scratch window
    D = num_taps - 1

    # Assemble the overlapping window once in VMEM scratch (one extra store of
    # the tile; negligible vs. the D+1 matmuls below).
    xw_ref[0:tile_q, :] = x_ref[0]
    xw_ref[tile_q:tile_q + D, :] = h_ref[0, 0]

    cw = o_ref.shape[-1]
    acc = jnp.zeros((tile_q, cw), jnp.float32)
    for d in range(num_taps):                     # num_taps = ceil(K/stride), tiny
        acc = acc + jnp.dot(xw_ref[D - d:D - d + tile_q, :], w_ref[d],
                            preferred_element_type=jnp.float32)
    o_ref[0] = (acc + b_ref[...].astype(jnp.float32)).astype(o_ref.dtype)


def _ctc1d_kernel_simple(x_ref, w_ref, b_ref, o_ref):
    # D == 0 (K <= stride): a single matmul per tile, no halo / scratch needed.
    acc = jnp.dot(x_ref[0], w_ref[0], preferred_element_type=jnp.float32)
    o_ref[0] = (acc + b_ref[...].astype(jnp.float32)).astype(o_ref.dtype)


def causal_conv_transpose1d(x, weight, bias=None, stride=1, *, time_tile=512):
    """Pallas equivalent of CausalConvTranspose1d.forward (PyTorch layouts)."""
    B, C_in, T_in = x.shape
    c_in_w, C_out, K = weight.shape
    assert c_in_w == C_in
    stride = int(stride)
    assert stride >= 1 and K >= 1 and T_in >= 1

    D = (K - 1) // stride                     # extra taps per phase
    num_taps = D + 1
    CW = stride * C_out                       # phase-packed (lane-dense) width
    L = (T_in - 1) * stride + K - stride      # module slices off the last `stride`
    assert L >= 1

    dt = x.dtype

    # ---- q-axis (output frame-group) tiling --------------------------------
    Tq = T_in + D                             # q rows covering every needed output
    # VMEM-aware cap: window + output tile + scratch per q-row, double-buffered.
    bytes_per_row = 4 * (CW + 3 * C_in) + 1
    cap_rows = max(8, (4 * 1024 * 1024) // bytes_per_row)
    tile_req = max(8, min(int(time_tile), cap_rows))
    if Tq <= tile_req:
        tile_q, n_q = Tq, 1
    else:
        tile_q = max(8, (tile_req // 8) * 8)  # keep sublane-divisible
        n_q = _cdiv(Tq, tile_q)
    Tq_pad = tile_q * n_q

    # ---- input: (B, C_in, T_in) -> zero-padded (B, Tq_pad + D, C_in) -------
    #      padded row p holds x[:, :, p - D] (zeros outside [0, T_in)).
    x_t = jnp.transpose(x, (0, 2, 1))                         # (B, T_in, C_in)
    x_full = jnp.pad(x_t, ((0, 0), (D, Tq_pad - T_in), (0, 0)))  # (B, Tq_pad+D, C_in)
    x_main = x_full[:, :Tq_pad, :]                            # streamed tiles
    if D > 0:
        # halo[b, j] = padded rows [(j+1)*tile_q, (j+1)*tile_q + D)
        idx = (jnp.arange(n_q)[:, None] + 1) * tile_q + jnp.arange(D)[None, :]
        x_halo = x_full[:, idx, :]                            # (B, n_q, D, C_in)

    # ---- weight: (C_in, C_out, K) -> phase-packed (num_taps, C_in, CW) -----
    #      w_cat[d, ci, r*C_out + co] = weight[ci, co, d*stride + r]
    K_pad = num_taps * stride
    w_pad = jnp.pad(weight.astype(dt), ((0, 0), (0, 0), (0, K_pad - K)))
    w_cat = jnp.transpose(w_pad.reshape(C_in, C_out, num_taps, stride),
                          (2, 0, 3, 1)).reshape(num_taps, C_in, CW)

    if bias is None:
        bias = jnp.zeros((C_out,), dt)
    b_row = jnp.tile(bias.astype(dt), (stride,)).reshape(1, CW)

    cparams = pltpu.CompilerParams(
        dimension_semantics=("parallel", "parallel"),
        vmem_limit_bytes=32 * 1024 * 1024,
    )

    if D > 0:
        kernel = functools.partial(_ctc1d_kernel_halo,
                                   num_taps=num_taps, tile_q=tile_q)
        out = pl.pallas_call(
            kernel,
            out_shape=jax.ShapeDtypeStruct((B, Tq_pad, CW), dt),
            grid_spec=pltpu.PrefetchScalarGridSpec(
                num_scalar_prefetch=0,
                grid=(B, n_q),
                in_specs=[
                    pl.BlockSpec((1, tile_q, C_in), lambda b, j: (b, j, 0)),
                    pl.BlockSpec((1, 1, D, C_in), lambda b, j: (b, j, 0, 0)),
                    pl.BlockSpec((num_taps, C_in, CW), lambda b, j: (0, 0, 0)),
                    pl.BlockSpec((1, CW), lambda b, j: (0, 0)),
                ],
                out_specs=pl.BlockSpec((1, tile_q, CW), lambda b, j: (b, j, 0)),
                scratch_shapes=[pltpu.VMEM((tile_q + D, C_in), dt)],
            ),
            compiler_params=cparams,
        )(x_main, x_halo, w_cat, b_row)
    else:
        out = pl.pallas_call(
            _ctc1d_kernel_simple,
            out_shape=jax.ShapeDtypeStruct((B, Tq_pad, CW), dt),
            grid_spec=pltpu.PrefetchScalarGridSpec(
                num_scalar_prefetch=0,
                grid=(B, n_q),
                in_specs=[
                    pl.BlockSpec((1, tile_q, C_in), lambda b, j: (b, j, 0)),
                    pl.BlockSpec((1, C_in, CW), lambda b, j: (0, 0, 0)),
                    pl.BlockSpec((1, CW), lambda b, j: (0, 0)),
                ],
                out_specs=pl.BlockSpec((1, tile_q, CW), lambda b, j: (b, j, 0)),
            ),
            compiler_params=cparams,
        )(x_main, w_cat, b_row)

    # Phase un-interleave is a *free* row-major reshape; then truncate to L and
    # put channels back in front (pure layout plumbing, no compute).
    y = out.reshape(B, Tq_pad * stride, C_out)[:, :L, :]
    return jnp.transpose(y, (0, 2, 1))                        # (B, C_out, L)


def _ref_causal_conv_transpose1d(x, w, b, stride):
    """Plain numpy reference of ConvTranspose1d(...)(x)[:, :, :-stride]."""
    x = np.asarray(x, np.float32)
    w = np.asarray(w, np.float32)
    b = np.asarray(b, np.float32)
    B, C_in, T_in = x.shape
    _, C_out, K = w.shape
    T_full = (T_in - 1) * stride + K
    y = np.zeros((B, C_out, T_full), np.float32)
    for i in range(T_in):
        for k in range(K):
            y[:, :, i * stride + k] += x[:, :, i] @ w[:, :, k]
    y += b[None, :, None]
    return y[:, :, :-stride]


if __name__ == "__main__":
    key = jax.random.PRNGKey(0)

    def _run_case(case_key, B, C_in, C_out, T_in, K, stride, time_tile=512):
        k1, k2, k3 = jax.random.split(case_key, 3)
        x = jax.random.normal(k1, (B, C_in, T_in), jnp.float32)
        w = jax.random.normal(k2, (C_in, C_out, K), jnp.float32) * 0.1
        b = jax.random.normal(k3, (C_out,), jnp.float32) * 0.1
        y = causal_conv_transpose1d(x, w, b, stride, time_tile=time_tile)
        jax.block_until_ready(y)
        y_ref = _ref_causal_conv_transpose1d(x, w, b, stride)
        assert y.shape == y_ref.shape, (y.shape, y_ref.shape)
        err = float(np.abs(np.asarray(y) - y_ref).max())
        assert np.allclose(np.asarray(y), y_ref, rtol=1e-4, atol=1e-5), err

    keys = jax.random.split(key, 5)
    # 1) kernel_size = 2*stride (typical causal deconv), single q-tile.
    _run_case(keys[0], B=2, C_in=8, C_out=16, T_in=16, K=8, stride=4)
    # 2) kernel_size not a multiple of stride (zero-padded tap path).
    _run_case(keys[1], B=1, C_in=4, C_out=3, T_in=9, K=5, stride=3)
    # 3) long sequence -> multiple q-tiles (exercises the halo path).
    _run_case(keys[2], B=2, C_in=8, C_out=8, T_in=100, K=8, stride=4, time_tile=16)
    # 4) K == stride -> D == 0 (single-matmul, no-halo path).
    _run_case(keys[3], B=2, C_in=8, C_out=16, T_in=16, K=4, stride=4)
    # 5) three taps (D == 2) with multiple q-tiles.
    _run_case(keys[4], B=1, C_in=8, C_out=4, T_in=37, K=11, stride=4, time_tile=16)

    print("KERNEL_OK")
</pallas_src>

<mosaic_0001>
module attributes {stable_mosaic.version = 11 : i64} {
  func.func @_ctc1d_kernel_halo(%arg0: i32, %arg1: i32, %arg2: memref<1x17x8xf32, #tpu.memory_space<vmem>>, %arg3: memref<1x1x1x8xf32, #tpu.memory_space<vmem>>, %arg4: memref<2x8x64xf32, #tpu.memory_space<vmem>>, %arg5: memref<1x64xf32, #tpu.memory_space<vmem>>, %arg6: memref<1x17x64xf32, #tpu.memory_space<vmem>>, %arg7: memref<18x8xf32, #tpu.memory_space<vmem>>) attributes {dimension_semantics = [#tpu.dimension_semantics<parallel>, #tpu.dimension_semantics<parallel>], iteration_bounds = array<i64: 2, 1>, scalar_prefetch = 0 : i64, scratch_operands = 1 : i64, tpu.core_type = #tpu.core_type<tc>, window_params = [{transform_indices = @transform_0, window_bounds = array<i64: 1, 17, 8>}, {transform_indices = @transform_1, window_bounds = array<i64: 1, 1, 1, 8>}, {pipeline_mode = #tpu.pipeline_mode<synchronous>, transform_indices = @transform_2, window_bounds = array<i64: 2, 8, 64>}, {pipeline_mode = #tpu.pipeline_mode<synchronous>, transform_indices = @transform_3, window_bounds = array<i64: 1, 64>}, {transform_indices = @transform_4, window_bounds = array<i64: 1, 17, 64>}]} {
    %c0 = arith.constant 0 : index
    %c0_0 = arith.constant 0 : index
    %c0_1 = arith.constant 0 : index
    %0 = vector.load %arg2[%c0, %c0_0, %c0_1] : memref<1x17x8xf32, #tpu.memory_space<vmem>>, vector<1x17x8xf32>
    %1 = vector.shape_cast %0 : vector<1x17x8xf32> to vector<17x8xf32>
    %c0_2 = arith.constant 0 : index
    %c0_3 = arith.constant 0 : index
    %2 = vector.load %arg7[%c0_2, %c0_3] : memref<18x8xf32, #tpu.memory_space<vmem>>, vector<17x8xf32>
    tpu.vector_store %arg7[%c0_2, %c0_3], %1 {strides = array<i32>} : memref<18x8xf32, #tpu.memory_space<vmem>>, vector<17x8xf32>,
    %c0_4 = arith.constant 0 : index
    %c0_5 = arith.constant 0 : index
    %c0_6 = arith.constant 0 : index
    %c0_7 = arith.constant 0 : index
    %3 = vector.load %arg3[%c0_4, %c0_5, %c0_6, %c0_7] : memref<1x1x1x8xf32, #tpu.memory_space<vmem>>, vector<1x1x1x8xf32>
    %4 = vector.shape_cast %3 : vector<1x1x1x8xf32> to vector<1x8xf32>
    %c17 = arith.constant 17 : index
    %c0_8 = arith.constant 0 : index
    %5 = vector.load %arg7[%c17, %c0_8] : memref<18x8xf32, #tpu.memory_space<vmem>>, vector<1x8xf32>
    tpu.vector_store %arg7[%c17, %c0_8], %4 {strides = array<i32>} : memref<18x8xf32, #tpu.memory_space<vmem>>, vector<1x8xf32>,
    %cst = arith.constant 0.000000e+00 : f32
    %6 = vector.broadcast %cst : f32 to vector<17x64xf32>
    %c1 = arith.constant 1 : index
    %c0_9 = arith.constant 0 : index
    %7 = vector.load %arg7[%c1, %c0_9] : memref<18x8xf32, #tpu.memory_space<vmem>>, vector<17x8xf32>
    %c0_10 = arith.constant 0 : index
    %c0_11 = arith.constant 0 : index
    %c0_12 = arith.constant 0 : index
    %8 = vector.load %arg4[%c0_10, %c0_11, %c0_12] : memref<2x8x64xf32, #tpu.memory_space<vmem>>, vector<1x8x64xf32>
    %9 = vector.shape_cast %8 : vector<1x8x64xf32> to vector<8x64xf32>
    %cst_13 = arith.constant dense<0.000000e+00> : vector<17x64xf32>
    %10 = tpu.matmul %7, %9, %cst_13 {dimension_numbers = #tpu.dot_dimension_numbers<[1], [0], [0], [1], [0, 0, 1, 1], [], []>} : vector<17x8xf32>, vector<8x64xf32>, vector<17x64xf32> -> vector<17x64xf32>
    %11 = arith.addf %6, %10 : vector<17x64xf32>
    %c0_14 = arith.constant 0 : index
    %c0_15 = arith.constant 0 : index
    %12 = vector.load %arg7[%c0_14, %c0_15] : memref<18x8xf32, #tpu.memory_space<vmem>>, vector<17x8xf32>
    %c1_16 = arith.constant 1 : index
    %c0_17 = arith.constant 0 : index
    %c0_18 = arith.constant 0 : index
    %13 = vector.load %arg4[%c1_16, %c0_17, %c0_18] : memref<2x8x64xf32, #tpu.memory_space<vmem>>, vector<1x8x64xf32>
    %14 = vector.shape_cast %13 : vector<1x8x64xf32> to vector<8x64xf32>
    %cst_19 = arith.constant dense<0.000000e+00> : vector<17x64xf32>
    %15 = tpu.matmul %12, %14, %cst_19 {dimension_numbers = #tpu.dot_dimension_numbers<[1], [0], [0], [1], [0, 0, 1, 1], [], []>} : vector<17x8xf32>, vector<8x64xf32>, vector<17x64xf32> -> vector<17x64xf32>
    %16 = arith.addf %11, %15 : vector<17x64xf32>
    %c0_20 = arith.constant 0 : index
    %c0_21 = arith.constant 0 : index
    %17 = vector.load %arg5[%c0_20, %c0_21] : memref<1x64xf32, #tpu.memory_space<vmem>>, vector<1x64xf32>
    %18 = vector.broadcast %17 : vector<1x64xf32> to vector<17x64xf32>
    %19 = arith.addf %16, %18 : vector<17x64xf32>
    %c0_22 = arith.constant 0 : index
    %c0_23 = arith.constant 0 : index
    %c0_24 = arith.constant 0 : index
    %20 = vector.load %arg6[%c0_22, %c0_23, %c0_24] : memref<1x17x64xf32, #tpu.memory_space<vmem>>, vector<1x17x64xf32>
    %21 = vector.shape_cast %20 : vector<1x17x64xf32> to vector<17x64xf32>
    %22 = vector.shape_cast %19 : vector<17x64xf32> to vector<1x17x64xf32>
    tpu.vector_store %arg6[%c0_22, %c0_23, %c0_24], %22 {strides = array<i32>} : memref<1x17x64xf32, #tpu.memory_space<vmem>>, vector<1x17x64xf32>,
    return
  }
  func.func @transform_0(%arg0: i32, %arg1: i32) -> (i32, i32, i32) {
    %c0_i32 = arith.constant 0 : i32
    %c0_i32_0 = arith.constant 0 : i32
    return %arg0, %arg1, %c0_i32 : i32, i32, i32
  }
  func.func @transform_1(%arg0: i32, %arg1: i32) -> (i32, i32, i32, i32) {
    %c0_i32 = arith.constant 0 : i32
    %c0_i32_0 = arith.constant 0 : i32
    %c0_i32_1 = arith.constant 0 : i32
    return %arg0, %arg1, %c0_i32, %c0_i32_0 : i32, i32, i32, i32
  }
  func.func @transform_2(%arg0: i32, %arg1: i32) -> (i32, i32, i32) {
    %c0_i32 = arith.constant 0 : i32
    %c0_i32_0 = arith.constant 0 : i32
    %c0_i32_1 = arith.constant 0 : i32
    %c0_i32_2 = arith.constant 0 : i32
    return %c0_i32, %c0_i32_0, %c0_i32_1 : i32, i32, i32
  }
  func.func @transform_3(%arg0: i32, %arg1: i32) -> (i32, i32) {
    %c0_i32 = arith.constant 0 : i32
    %c0_i32_0 = arith.constant 0 : i32
    %c0_i32_1 = arith.constant 0 : i32
    return %c0_i32, %c0_i32_0 : i32, i32
  }
  func.func @transform_4(%arg0: i32, %arg1: i32) -> (i32, i32, i32) {
    %c0_i32 = arith.constant 0 : i32
    %c0_i32_0 = arith.constant 0 : i32
    return %arg0, %arg1, %c0_i32 : i32, i32, i32
  }
}

</mosaic_0001>

<llo_original>
// kernel: tpu_custom_call.1
$region0: #{tpu_custom_call.1}
  #allocation0 [shape = 'u32[]', space=smem, size = 0x4, offset = 0x4, fixed_abs, tag = 'smem constant byte address 0x4 - core index']
  #allocation1 [shape = 'u32[144,128]{1,0:T(1,128)}', space=vmem, size = 0x12000, scoped, tag = 'internal scratch']
  #allocation2 [shape = 'f32[18,8]{1,0:T(8,128)}', space=vmem, size = 0x3000, scoped, tag = 'scratch operand']
  %s0 = inlined_call_operand.vmem [shape: f32[2,17,8], index: 0, kind: input, shape index: {}]
  %s1 = inlined_call_operand.vmem [shape: f32[2,1,1,8], index: 1, kind: input, shape index: {}]
  %s2 = inlined_call_operand.vmem [shape: f32[2,8,64], index: 2, kind: input, shape index: {}]
  %s3 = inlined_call_operand.vmem [shape: f32[1,64], index: 3, kind: input, shape index: {}]
  %s4 = inlined_call_operand.vmem [shape: f32[2,17,64], index: 4, kind: output, shape index: {}]
  %s5 = sld [smem:[#allocation0]]
  $region49: #{tpu_custom_call.1} parent=0
    _
  %s7 = ssub.s32 1, %s5
  %s8 = scalar_select 0, %s7, %s5
  loop: start=0, step=1, limit=4
  $region2: #{tpu_custom_call.1} parent=0 // loop_pre_header
    _
  $region3: #{tpu_custom_call.1} parent=0 // loop_header
    %s10 = sphi 0, %s14
    %p11 = scmp.ge.s32.totalorder %s10, 4
    %s17 = sphi 0, %s29
    %s18 = sphi 0, %s25
    %s19 = sphi 0, %s17
    %s20 = sphi 0, %s18
    %s21 = sphi 0, %s19
    %s22 = sphi 0, %s20
    %s34 = sphi 0, %s36
    %s37 = sphi 0, %s34
    %s38 = sphi 0, %s37
    %s54 = sphi 0, %s38
    %s62 = sphi 0, %s64
    %s65 = sphi 0, %s62
    %s66 = sphi 0, %s65
    %s82 = sphi 0, %s66
    %s86 = sphi 0, %s86
    %s88 = sphi 0, %s86
    %s89 = sphi 0, %s88
    %s103 = sphi 0, %s89
    %s107 = sphi 0, %s107
    %s109 = sphi 0, %s107
    %s110 = sphi 0, %s109
    %s124 = sphi 0, %s110
    %s132 = sphi 0, %s134
    %s135 = sphi 0, %s132
    %s136 = sphi 0, %s135
    %s152 = sphi 0, %s136
  $region4: #{tpu_custom_call.1} parent=0 // loop_header_branch
    %13 = sbr.rel (%p11) target = $region8
  $region5: #{tpu_custom_call.1} parent=0 // loop_body
    %s15 = ssub.s32 %s10, 1
    %s16 = ssub.s32 %s10, 2
    %s23 = sadd.s32 1, %s18
    %p24 = scmp.ge.s32.totalorder %s23, 1
    %s25 = scalar_select %p24, 0, %s23
    %s26 = sadd.s32 1, %s17
    %s27 = scalar_select %p24, %s26, %s17
    %p28 = scmp.ge.s32.totalorder %s27, 2
    %s29 = scalar_select %p28, 0, %s27
    %s30 = ssub.s32 %s17, %s29
    %s31 = ssub.s32 %s18, %s25
    %s32 = sor.u32 %s30, %s31
    %p33 = scmp.eq.s32.totalorder %s32, 0
    %s35 = sadd.s32 %s34, 1
    %s36 = scalar_select %p33, %s34, %s35
    %p39 = pneg %p33
    %p40 = scmp.eq.s32.totalorder %s10, 1
    %p41 = por %p39, %p40
    %p42 = scmp.ne.s32.totalorder %s34, %s37
    %p43 = scmp.eq.s32.totalorder %s10, 0
    %p44 = por %p42, %p43
    %p45 = scmp.ne.s32.totalorder %s34, %s37
    %p46 = scmp.eq.s32.totalorder %s15, 1
    %p47 = por %p45, %p46
    %p48 = scmp.ne.s32.totalorder %s37, %s38
    %p49 = scmp.eq.s32.totalorder %s15, 0
    %p50 = por %p48, %p49
    %p51 = scmp.ne.s32.totalorder %s37, %s38
    %p52 = scmp.eq.s32.totalorder %s16, 1
    %p53 = por %p51, %p52
    %p55 = scmp.ne.s32.totalorder %s38, %s54
    %p56 = scmp.eq.s32.totalorder %s16, 0
    %p57 = por %p55, %p56
    %s58 = ssub.s32 %s17, %s29
    %s59 = ssub.s32 %s18, %s25
    %s60 = sor.u32 %s58, %s59
    %p61 = scmp.eq.s32.totalorder %s60, 0
    %s63 = sadd.s32 %s62, 1
    %s64 = scalar_select %p61, %s62, %s63
    %p67 = pneg %p61
    %p68 = scmp.eq.s32.totalorder %s10, 1
    %p69 = por %p67, %p68
    %p70 = scmp.ne.s32.totalorder %s62, %s65
    %p71 = scmp.eq.s32.totalorder %s10, 0
    %p72 = por %p70, %p71
    %p73 = scmp.ne.s32.totalorder %s62, %s65
    %p74 = scmp.eq.s32.totalorder %s15, 1
    %p75 = por %p73, %p74
    %p76 = scmp.ne.s32.totalorder %s65, %s66
    %p77 = scmp.eq.s32.totalorder %s15, 0
    %p78 = por %p76, %p77
    %p79 = scmp.ne.s32.totalorder %s65, %s66
    %p80 = scmp.eq.s32.totalorder %s16, 1
    %p81 = por %p79, %p80
    %p83 = scmp.ne.s32.totalorder %s66, %s82
    %p84 = scmp.eq.s32.totalorder %s16, 0
    %p85 = por %p83, %p84
    %s87 = sadd.s32 %s86, 1
    %p90 = scmp.eq.s32.totalorder %s10, 1
    %p91 = scmp.ne.s32.totalorder %s86, %s88
    %p92 = scmp.eq.s32.totalorder %s10, 0
    %p93 = por %p91, %p92
    %p94 = scmp.ne.s32.totalorder %s86, %s88
    %p95 = scmp.eq.s32.totalorder %s15, 1
    %p96 = por %p94, %p95
    %p97 = scmp.ne.s32.totalorder %s88, %s89
    %p98 = scmp.eq.s32.totalorder %s15, 0
    %p99 = por %p97, %p98
    %p100 = scmp.ne.s32.totalorder %s88, %s89
    %p101 = scmp.eq.s32.totalorder %s16, 1
    %p102 = por %p100, %p101
    %p104 = scmp.ne.s32.totalorder %s89, %s103
    %p105 = scmp.eq.s32.totalorder %s16, 0
    %p106 = por %p104, %p105
    %s108 = sadd.s32 %s107, 1
    %p111 = scmp.eq.s32.totalorder %s10, 1
    %p112 = scmp.ne.s32.totalorder %s107, %s109
    %p113 = scmp.eq.s32.totalorder %s10, 0
    %p114 = por %p112, %p113
    %p115 = scmp.ne.s32.totalorder %s107, %s109
    %p116 = scmp.eq.s32.totalorder %s15, 1
    %p117 = por %p115, %p116
    %p118 = scmp.ne.s32.totalorder %s109, %s110
    %p119 = scmp.eq.s32.totalorder %s15, 0
    %p120 = por %p118, %p119
    %p121 = scmp.ne.s32.totalorder %s109, %s110
    %p122 = scmp.eq.s32.totalorder %s16, 1
    %p123 = por %p121, %p122
    %p125 = scmp.ne.s32.totalorder %s110, %s124
    %p126 = scmp.eq.s32.totalorder %s16, 0
    %p127 = por %p125, %p126
    %s128 = ssub.s32 %s17, %s29
    %s129 = ssub.s32 %s18, %s25
    %s130 = sor.u32 %s128, %s129
    %p131 = scmp.eq.s32.totalorder %s130, 0
    %s133 = sadd.s32 %s132, 1
    %s134 = scalar_select %p131, %s132, %s133
    %p137 = pneg %p131
    %p138 = scmp.eq.s32.totalorder %s10, 1
    %p139 = por %p137, %p138
    %p140 = scmp.ne.s32.totalorder %s132, %s135
    %p141 = scmp.eq.s32.totalorder %s10, 0
    %p142 = por %p140, %p141
    %p143 = scmp.ne.s32.totalorder %s132, %s135
    %p144 = scmp.eq.s32.totalorder %s15, 1
    %p145 = por %p143, %p144
    %p146 = scmp.ne.s32.totalorder %s135, %s136
    %p147 = scmp.eq.s32.totalorder %s15, 0
    %p148 = por %p146, %p147
    %p149 = scmp.ne.s32.totalorder %s135, %s136
    %p150 = scmp.eq.s32.totalorder %s16, 1
    %p151 = por %p149, %p150
    %p153 = scmp.ne.s32.totalorder %s136, %s152
    %p154 = scmp.eq.s32.totalorder %s16, 0
    %p155 = por %p153, %p154
    %p156 = scmp.le.s32.totalorder 1, %s10
    %p157 = scmp.lt.s32.totalorder %s10, 3
    %p158 = pnand %p156, %p157
    %p159 = pneg %p158
    // Predicated region
    $region9: #{tpu_custom_call.1} parent=5 // pred_check
      _
    $region10: #{tpu_custom_call.1} parent=5 // pred_check_branch
      %161 = sbr.rel (%p158) target = $region12
    $region11: #{tpu_custom_call.1} parent=5 // pred_region
      %s162 = ssub.s32 %s10, 1
      // Predicated region
      $region13: #{tpu_custom_call.1} parent=11 // pred_check
        %p163 = pneg %p99
      $region14: #{tpu_custom_call.1} parent=11 // pred_check_branch
        %165 = sbr.rel (%p163) target = $region16
      $region15: #{tpu_custom_call.1} parent=11 // pred_region
        _
      $region16: #{tpu_custom_call.1} parent=11 // pred_fallthru
        _
      // Predicated region
      $region17: #{tpu_custom_call.1} parent=11 // pred_check
        %p166 = pneg %p120
      $region18: #{tpu_custom_call.1} parent=11 // pred_check_branch
        %168 = sbr.rel (%p166) target = $region20
      $region19: #{tpu_custom_call.1} parent=11 // pred_region
        _
      $region20: #{tpu_custom_call.1} parent=11 // pred_fallthru
        _
    $region12: #{tpu_custom_call.1} parent=5 // pred_fallthru
      _
    %p169 = scmp.lt.s32.totalorder %s10, 2
    // Predicated region
    $region21: #{tpu_custom_call.1} parent=5 // pred_check
      %p170 = pneg %p169
    $region22: #{tpu_custom_call.1} parent=5 // pred_check_branch
      %172 = sbr.rel (%p170) target = $region24
    $region23: #{tpu_custom_call.1} parent=5 // pred_region
      // Predicated region
      $region25: #{tpu_custom_call.1} parent=23 // pred_check
        %p173 = pneg %p44
      $region26: #{tpu_custom_call.1} parent=23 // pred_check_branch
        %175 = sbr.rel (%p173) target = $region28
      $region27: #{tpu_custom_call.1} parent=23 // pred_region
        %s176 = smul.u32 3, %s18
        %p177 = scmp.lt.s32.totalorder %s17, 1
        %s178 = scalar_select %p177, %s17, 1
        %p179 = scmp.lt.s32.totalorder %s176, 2
        %s180 = scalar_select %p179, %s176, 2
        %s181 = smul.addr %s178, 3
        %s182 = sadd.s32 %s180, %s181
        %s183 = smul.addr %s182, 8
        %s184 = scalar_lea.vmem %s0, %s183
        %s185 = smul.u32 3, %s18
      $region28: #{tpu_custom_call.1} parent=23 // pred_fallthru
        _
      // Predicated region
      $region29: #{tpu_custom_call.1} parent=23 // pred_check
        %p186 = pneg %p72
      $region30: #{tpu_custom_call.1} parent=23 // pred_check_branch
        %188 = sbr.rel (%p186) target = $region32
      $region31: #{tpu_custom_call.1} parent=23 // pred_region
        %p189 = scmp.lt.s32.totalorder %s17, 1
        %s190 = scalar_select %p189, %s17, 1
        %p191 = scmp.lt.s32.totalorder %s18, 0
        %s192 = scalar_select %p191, %s18, 0
        %s193 = sadd.s32 %s192, %s190
        %s194 = scalar_lea.vmem %s1, %s193
      $region32: #{tpu_custom_call.1} parent=23 // pred_fallthru
        _
    $region24: #{tpu_custom_call.1} parent=5 // pred_fallthru
      _
    %p195 = scmp.le.s32.totalorder 1, %s10
    %p196 = scmp.lt.s32.totalorder %s10, 3
    %p197 = pnand %p195, %p196
    %p198 = pneg %p197
    // Predicated region
    $region33: #{tpu_custom_call.1} parent=5 // pred_check
      _
    $region34: #{tpu_custom_call.1} parent=5 // pred_check_branch
      %200 = sbr.rel (%p197) target = $region36
    $region35: #{tpu_custom_call.1} parent=5 // pred_region
      %s201 = ssub.s32 %s10, 1
      %s202 = smul.u32 3, %s20
      %p203 = scmp.lt.s32.totalorder %s19, 1
      %s204 = scalar_select %p203, %s19, 1
      %p205 = scmp.lt.s32.totalorder %s202, 2
      %s206 = scalar_select %p205, %s202, 2
      %s207 = smul.addr %s204, 3
      %s208 = sadd.s32 %s206, %s207
      %s209 = smul.addr %s208, 8
      %s210 = scalar_lea.vmem %s0, %s209
      %p211 = pneg %p50
      %p212 = pneg %p47
      %p213 = scmp.lt.s32.totalorder %s19, 1
      %s214 = scalar_select %p213, %s19, 1
      %p215 = scmp.lt.s32.totalorder %s20, 0
      %s216 = scalar_select %p215, %s20, 0
      %s217 = sadd.s32 %s216, %s214
      %s218 = scalar_lea.vmem %s1, %s217
      %p219 = pneg %p78
      %p220 = pneg %p75
      %p221 = pneg %p99
      %p222 = pneg %p96
      %p223 = pneg %p120
      %p224 = pneg %p117
      %p225 = pneg %p148
      %p226 = pneg %p145
      %s227 = smul.u32 3, %s20
      %p228 = scmp.lt.s32.totalorder %s19, 1
      %s229 = scalar_select %p228, %s19, 1
      %p230 = scmp.lt.s32.totalorder %s227, 2
      %s231 = scalar_select %p230, %s227, 2
      %s232 = smul.addr %s229, 3
      %s233 = sadd.s32 %s231, %s232
      %s234 = smul.addr %s233, 8
      %s235 = scalar_lea.vmem %s4, %s234
      %s236 = smul.u32 3, %s20
      %p237 = scmp.lt.s32.totalorder %s19, 1
      %s238 = scalar_select %p237, %s19, 1
      %p239 = scmp.lt.s32.totalorder %s236, 2
      %s240 = scalar_select %p239, %s236, 2
      %s241 = smul.addr %s238, 3
      %s242 = sadd.s32 %s240, %s241
      %s243 = smul.addr %s242, 8
      %s244 = scalar_lea.vmem %s0, %s243
      %s245 = smul.u32 3, %s20
      %p246 = scmp.lt.s32.totalorder %s19, 1
      %s247 = scalar_select %p246, %s19, 1
      %p248 = scmp.lt.s32.totalorder %s20, 0
      %s249 = scalar_select %p248, %s20, 0
      %s250 = sadd.s32 %s249, %s247
      %s251 = scalar_lea.vmem %s1, %s250
      %s252 = smul.u32 3, %s20
      %p253 = scmp.lt.s32.totalorder %s19, 1
      %s254 = scalar_select %p253, %s19, 1
      %p255 = scmp.lt.s32.totalorder %s252, 2
      %s256 = scalar_select %p255, %s252, 2
      %s257 = smul.addr %s254, 3
      %s258 = sadd.s32 %s256, %s257
      %s259 = smul.addr %s258, 8
      %s260 = scalar_lea.vmem %s4, %s259
      %s261 = smul.u32 3, %s20
      %v262 = vld [vmem:[%s244] sm:$0xff]
      %v263 = vld [vmem:[%s244 + $0x8] sm:$0xff]
      %v264 = vld [vmem:[%s244 + $0x10] sm:$0x1]
      %vm265 = vcmask 64512
      %266 = vst.msk [vmem:[#allocation2] sm:$0xff] %vm265, %v262
      %267 = vst.msk [vmem:[#allocation2 + $0x8] sm:$0xff] %vm265, %v263
      %vm268 = vcmask 57344
      %269 = vst.msk [vmem:[#allocation2 + $0x10] sm:$0x1] %vm268, %v264
      %v270 = vld [vmem:[%s251] sm:$0x1]
      %271 = vst.msk [vmem:[#allocation2 + $0x11] sm:$0x1] %vm268, %v270
      %v272 = vld [vmem:[#allocation2 + $0x1] sm:$0xff]
      %v273 = vld [vmem:[#allocation2 + $0x9] sm:$0xff]
      %v274 = vld [vmem:[#allocation2 + $0x11] sm:$0x1]
      %v275 = vld [vmem:[%s2] sm:$0xff]
      %v276 = vld [vmem:[#allocation2] sm:$0xff]
      %v277 = vld [vmem:[#allocation2 + $0x8] sm:$0xff]
      %v278 = vld [vmem:[#allocation2 + $0x10] sm:$0x1]
      %s279 = scalar_lea.vmem %s2, 8
      %v280 = vld [vmem:[%s279] sm:$0xff]
      %v282 = vsel %vm265, %v276, 0
      %v285 = vsel %vm265, %v277, 0
      %v288 = vsel %vm265, %v278, 0
      %290 = vmatprep.subr.mxu0 0.0
      %291 = vmatpush1.msra.mxu0 %v280
      %292 = vmatprep.subr.mxu0 0.0
      %293 = vmatpush1.msra.mxu0 0.0
      %294 = vmatprep.subr.mxu0 0.0
      %295 = vmatpush1.msra.mxu0 0.0
      %296 = vmatprep.subr.mxu0 0.0
      %297 = vmatpush1.msra.mxu0 0.0
      %298 = vmatprep.subr.mxu0 0.0
      %299 = vmatpush1.msra.mxu0 0.0
      %300 = vmatprep.subr.mxu0 0.0
      %301 = vmatpush1.msra.mxu0 0.0
      %302 = vmatprep.subr.mxu0 0.0
      %303 = vmatpush1.msra.mxu0 0.0
      %304 = vmatprep.subr.mxu0 0.0
      %305 = vmatpush1.msra.mxu0 0.0
      %306 = vmatprep.subr.mxu0 0.0
      %307 = vmatpush1.msra.mxu0 0.0
      %308 = vmatprep.subr.mxu0 0.0
      %309 = vmatpush1.msra.mxu0 0.0
      %310 = vmatprep.subr.mxu0 0.0
      %311 = vmatpush1.msra.mxu0 0.0
      %312 = vmatprep.subr.mxu0 0.0
      %313 = vmatpush1.msra.mxu0 0.0
      %314 = vmatprep.subr.mxu0 0.0
      %315 = vmatpush1.msra.mxu0 0.0
      %316 = vmatprep.subr.mxu0 0.0
      %317 = vmatpush1.msra.mxu0 0.0
      %318 = vmatprep.subr.mxu0 0.0
      %319 = vmatpush1.msra.mxu0 0.0
      %320 = vmatprep.subr.mxu0 0.0
      %321 = vmatpush1.msra.mxu0 0.0
      %322 = vmatprep.subr.mxu0 0.0
      %323 = vmatpush1.msra.mxu0 0.0
      %324 = vmatprep.subr.mxu0 0.0
      %325 = vmatpush1.msra.mxu0 0.0
      %326 = vmatprep.subr.mxu0 0.0
      %327 = vmatpush1.msra.mxu0 0.0
      %328 = vmatprep.subr.mxu0 0.0
      %329 = vmatpush1.msra.mxu0 0.0
      %330 = vmatprep.subr.mxu0 0.0
      %331 = vmatpush1.msra.mxu0 0.0
      %332 = vmatprep.subr.mxu0 0.0
      %333 = vmatpush1.msra.mxu0 0.0
      %334 = vmatprep.subr.mxu0 0.0
      %335 = vmatpush1.msra.mxu0 0.0
      %336 = vmatprep.subr.mxu0 0.0
      %337 = vmatpush1.msra.mxu0 0.0
      %338 = vmatprep.subr.mxu0 0.0
      %339 = vmatpush1.msra.mxu0 0.0
      %340 = vmatprep.subr.mxu0 0.0
      %341 = vmatpush1.msra.mxu0 0.0
      %342 = vmatprep.subr.mxu0 0.0
      %343 = vmatpush1.msra.mxu0 0.0
      %344 = vmatprep.subr.mxu0 0.0
      %345 = vmatpush1.msra.mxu0 0.0
      %346 = vmatprep.subr.mxu0 0.0
      %347 = vmatpush1.msra.mxu0 0.0
      %348 = vmatprep.subr.mxu0 0.0
      %349 = vmatpush1.msra.mxu0 0.0
      %350 = vmatprep.subr.mxu0 0.0
      %351 = vmatpush1.msra.mxu0 0.0
      %352 = vmatprep.subr.mxu0 0.0
      %353 = vmatpush1.msra.mxu0 0.0
      %354 = vmatprep.mubr.f32.mxu0 0.0
      %355 = vmatmul.mubr.f32.gmra.mrb[0].mxu0 %v282
      %v356 = vpop.f32.mrb[0].mxu0
      %v357 = vadd.f32 0.0, %v356
      %v358 = vpop.f32.mrb[0].mxu0
      %359 = vmatprep.mubr.f32.mxu0 0.0
      %360 = vmatmul.mubr.f32.gmra.mrb[0].mxu0 %v285
      %v361 = vpop.f32.mrb[0].mxu0
      %v362 = vadd.f32 0.0, %v361
      %v363 = vpop.f32.mrb[0].mxu0
      %364 = vmatprep.mubr.f32.mxu0 0.0
      %365 = vmatmul.mubr.f32.gmra.mrb[0].mxu0 %v288
      %v366 = vpop.f32.mrb[0].mxu0
      %v367 = vadd.f32 0.0, %v366
      %v368 = vpop.f32.mrb[0].mxu0
      %369 = vdwg.mxu0
      %v371 = vsel %vm265, %v272, 0
      %v374 = vsel %vm265, %v273, 0
      %v377 = vsel %vm265, %v274, 0
      %379 = vmatprep.subr.mxu0 0.0
      %380 = vmatpush1.msra.mxu0 %v275
      %381 = vmatprep.subr.mxu0 0.0
      %382 = vmatpush1.msra.mxu0 0.0
      %383 = vmatprep.subr.mxu0 0.0
      %384 = vmatpush1.msra.mxu0 0.0
      %385 = vmatprep.subr.mxu0 0.0
      %386 = vmatpush1.msra.mxu0 0.0
      %387 = vmatprep.subr.mxu0 0.0
      %388 = vmatpush1.msra.mxu0 0.0
      %389 = vmatprep.subr.mxu0 0.0
      %390 = vmatpush1.msra.mxu0 0.0
      %391 = vmatprep.subr.mxu0 0.0
      %392 = vmatpush1.msra.mxu0 0.0
      %393 = vmatprep.subr.mxu0 0.0
      %394 = vmatpush1.msra.mxu0 0.0
      %395 = vmatprep.subr.mxu0 0.0
      %396 = vmatpush1.msra.mxu0 0.0
      %397 = vmatprep.subr.mxu0 0.0
      %398 = vmatpush1.msra.mxu0 0.0
      %399 = vmatprep.subr.mxu0 0.0
      %400 = vmatpush1.msra.mxu0 0.0
      %401 = vmatprep.subr.mxu0 0.0
      %402 = vmatpush1.msra.mxu0 0.0
      %403 = vmatprep.subr.mxu0 0.0
      %404 = vmatpush1.msra.mxu0 0.0
      %405 = vmatprep.subr.mxu0 0.0
      %406 = vmatpush1.msra.mxu0 0.0
      %407 = vmatprep.subr.mxu0 0.0
      %408 = vmatpush1.msra.mxu0 0.0
      %409 = vmatprep.subr.mxu0 0.0
      %410 = vmatpush1.msra.mxu0 0.0
      %411 = vmatprep.subr.mxu0 0.0
      %412 = vmatpush1.msra.mxu0 0.0
      %413 = vmatprep.subr.mxu0 0.0
      %414 = vmatpush1.msra.mxu0 0.0
      %415 = vmatprep.subr.mxu0 0.0
      %416 = vmatpush1.msra.mxu0 0.0
      %417 = vmatprep.subr.mxu0 0.0
      %418 = vmatpush1.msra.mxu0 0.0
      %419 = vmatprep.subr.mxu0 0.0
      %420 = vmatpush1.msra.mxu0 0.0
      %421 = vmatprep.subr.mxu0 0.0
      %422 = vmatpush1.msra.mxu0 0.0
      %423 = vmatprep.subr.mxu0 0.0
      %424 = vmatpush1.msra.mxu0 0.0
      %425 = vmatprep.subr.mxu0 0.0
      %426 = vmatpush1.msra.mxu0 0.0
      %427 = vmatprep.subr.mxu0 0.0
      %428 = vmatpush1.msra.mxu0 0.0
      %429 = vmatprep.subr.mxu0 0.0
      %430 = vmatpush1.msra.mxu0 0.0
      %431 = vmatprep.subr.mxu0 0.0
      %432 = vmatpush1.msra.mxu0 0.0
      %433 = vmatprep.subr.mxu0 0.0
      %434 = vmatpush1.msra.mxu0 0.0
      %435 = vmatprep.subr.mxu0 0.0
      %436 = vmatpush1.msra.mxu0 0.0
      %437 = vmatprep.subr.mxu0 0.0
      %438 = vmatpush1.msra.mxu0 0.0
      %439 = vmatprep.subr.mxu0 0.0
      %440 = vmatpush1.msra.mxu0 0.0
      %441 = vmatprep.subr.mxu0 0.0
      %442 = vmatpush1.msra.mxu0 0.0
      %443 = vmatprep.mubr.f32.mxu0 0.0
      %444 = vmatmul.mubr.f32.gmra.mrb[0].mxu0 %v371
      %v445 = vpop.f32.mrb[0].mxu0
      %v446 = vadd.f32 %v357, %v445
      %v447 = vpop.f32.mrb[0].mxu0
      %448 = vmatprep.mubr.f32.mxu0 0.0
      %449 = vmatmul.mubr.f32.gmra.mrb[0].mxu0 %v374
      %v450 = vpop.f32.mrb[0].mxu0
      %v451 = vadd.f32 %v362, %v450
      %v452 = vpop.f32.mrb[0].mxu0
      %453 = vmatprep.mubr.f32.mxu0 0.0
      %454 = vmatmul.mubr.f32.gmra.mrb[0].mxu0 %v377
      %v455 = vpop.f32.mrb[0].mxu0
      %v456 = vadd.f32 %v367, %v455
      %v457 = vpop.f32.mrb[0].mxu0
      %458 = vdwg.mxu0
      %v459 = vld [vmem:[%s3] sm:$0x1]
      %v461 = vlaneseq
      %v462 = vshrl.u32 %v461, 7
      %v463 = vsub.s32 0, %v462
      %v464 = vrot.slane %v459, %v463
      %v466 = vadd.f32 %v446, %v464
      %v467 = vadd.f32 %v451, %v464
      %v468 = vadd.f32 %v456, %v464
      %vm469 = vcmask 523264
      %470 = vst.msk [vmem:[%s260] sm:$0xff] %vm469, %v466
      %471 = vst.msk [vmem:[%s260 + $0x8] sm:$0xff] %vm469, %v467
      %vm472 = vcmask 516096
      %473 = vst.msk [vmem:[%s260 + $0x10] sm:$0x1] %vm472, %v468
      %s474 = smul.u32 3, %s20
      %p475 = scmp.lt.s32.totalorder %s19, 1
      %s476 = scalar_select %p475, %s19, 1
      %p477 = scmp.lt.s32.totalorder %s474, 2
      %s478 = scalar_select %p477, %s474, 2
      %s479 = smul.addr %s476, 3
      %s480 = sadd.s32 %s478, %s479
      %s481 = smul.addr %s480, 8
      %s482 = scalar_lea.vmem %s4, %s481
      // Predicated region
      $region37: #{tpu_custom_call.1} parent=35 // pred_check
        %p483 = pneg %p145
      $region38: #{tpu_custom_call.1} parent=35 // pred_check_branch
        %485 = sbr.rel (%p483) target = $region40
      $region39: #{tpu_custom_call.1} parent=35 // pred_region
        %s486 = smul.u32 3, %s20
      $region40: #{tpu_custom_call.1} parent=35 // pred_fallthru
        _
    $region36: #{tpu_custom_call.1} parent=5 // pred_fallthru
      _
    %p487 = scmp.le.s32.totalorder 2, %s10
    // Predicated region
    $region41: #{tpu_custom_call.1} parent=5 // pred_check
      %p488 = pneg %p487
    $region42: #{tpu_custom_call.1} parent=5 // pred_check_branch
      %490 = sbr.rel (%p488) target = $region44
    $region43: #{tpu_custom_call.1} parent=5 // pred_region
      %s491 = ssub.s32 %s10, 2
      // Predicated region
      $region45: #{tpu_custom_call.1} parent=43 // pred_check
        %p492 = pneg %p151
      $region46: #{tpu_custom_call.1} parent=43 // pred_check_branch
        %494 = sbr.rel (%p492) target = $region48
      $region47: #{tpu_custom_call.1} parent=43 // pred_region
        %s495 = smul.u32 3, %s22
        %p496 = scmp.lt.s32.totalorder %s21, 1
        %s497 = scalar_select %p496, %s21, 1
        %p498 = scmp.lt.s32.totalorder %s495, 2
        %s499 = scalar_select %p498, %s495, 2
        %s500 = smul.addr %s497, 3
        %s501 = sadd.s32 %s499, %s500
        %s502 = smul.addr %s501, 8
        %s503 = scalar_lea.vmem %s4, %s502
      $region48: #{tpu_custom_call.1} parent=43 // pred_fallthru
        _
    $region44: #{tpu_custom_call.1} parent=5 // pred_fallthru
      _
  $region6: #{tpu_custom_call.1} parent=0 // loop_footer
    %s14 = sadd.s32 1, %s10
  $region7: #{tpu_custom_call.1} parent=0 // loop_footer_branch
    %9 = sbr.rel target = $region3
  $region8: #{tpu_custom_call.1} parent=0 // loop_exit
    _

</llo_original>
